<compile_context>
chip_gen: v7x
topology: tpu7x:2x2x1
jax: 0.10.0
libtpu: 0.0.40
codegen_flags: <defaults>
</compile_context>

<pallas_src>
import functools

import jax
import jax.numpy as jnp
from jax import lax
from jax.experimental import pallas as pl
from jax.experimental.pallas import tpu as pltpu


def _round_up(x, m):
    return ((x + m - 1) // m) * m


def _pick_batch_tile(batch, block_batch):
    """Choose the batch tile (multiple of 128) and the padded batch.

    Targets ~4 tiles (keeps both v7x TensorCores fed, restores pipelining),
    caps the tile at 4096 (lane-padded natural-layout buffers stay well under
    the scoped-VMEM default), and prefers a tile that divides the 128-padded
    batch so the wrapper-side pad copy of x is avoided when possible.
    """
    padded128 = _round_up(batch, 128)
    if block_batch is None:
        tb = _round_up(pl.cdiv(padded128, 4), 128)   # aim for ~4 grid tiles
    else:
        tb = _round_up(block_batch, 128)
    tb = max(128, min(tb, 4096, padded128))
    if padded128 % tb:
        # Look for a divisor of the 128-padded batch, but never shrink below
        # half the target tile (per-step overhead would dominate again).
        for cand in range(tb - 128, max(128, tb // 2) - 1, -128):
            if padded128 % cand == 0:
                tb = cand
                break
    padded = _round_up(batch, tb)
    return tb, padded


def mlp_kernel(x_ref, w1_ref, b1_ref, w2_ref, b2_ref, w3_ref, b3_ref,
               w4t_ref, b4_ref, o_ref, *, tanh_dtype):
    # Weights w1..w3 are PyTorch layout (out, in); w4t is pre-transposed
    # (in, out).  x tile is natural (tb, in); intermediates are (features, tb)
    # so bias-add / tanh are lane-dense; the output tile is natural (tb, out).
    wdt = w1_ref.dtype

    # Layer 1: NT matmul  (h1, in) x (tb, in)^T -> (h1, tb)
    x = x_ref[...].astype(wdt)
    h = lax.dot_general(w1_ref[...], x, (((1,), (1,)), ((), ())),
                        preferred_element_type=jnp.float32)
    h = jnp.tanh((h + b1_ref[...]).astype(tanh_dtype)).astype(wdt)

    # Layers 2/3: standard NN matmuls, batch stays on the lane axis.
    h = jnp.dot(w2_ref[...], h, preferred_element_type=jnp.float32)
    h = jnp.tanh((h + b2_ref[...]).astype(tanh_dtype)).astype(wdt)

    h = jnp.dot(w3_ref[...], h, preferred_element_type=jnp.float32)
    h = jnp.tanh((h + b3_ref[...]).astype(tanh_dtype)).astype(wdt)

    # Layer 4: TN matmul  (h3, tb)^T x (h3, out) -> (tb, out)  (natural output)
    out = lax.dot_general(h, w4t_ref[...], (((0,), (0,)), ((), ())),
                          preferred_element_type=jnp.float32)
    o_ref[...] = (out + b4_ref[...]).astype(o_ref.dtype)


@functools.partial(jax.jit, static_argnames=("block_batch", "tanh_in_bf16"))
def mlp_uint_forward(x, params, *, block_batch=None, tanh_in_bf16=False):
    """x: (batch, input_size) f32.  params: PyTorch-layout weights/biases
    (w{i}: (out, in), any dtype - bf16 recommended; b{i}: (out,) f32).
    Returns (batch, out_size) f32, matching the nn.Sequential forward
    (modulo the weight dtype)."""
    batch, in_size = x.shape
    h1 = params["w1"].shape[0]
    h2 = params["w2"].shape[0]
    h3 = params["w3"].shape[0]
    out_size = params["w4"].shape[0]

    tb, padded = _pick_batch_tile(batch, block_batch)
    nb = padded // tb

    if padded != batch:
        # Zero rows -> tanh(bias) garbage in the pad region, sliced off below.
        x = jnp.pad(x, ((0, padded - batch), (0, 0)))

    w1, w2, w3 = params["w1"], params["w2"], params["w3"]
    w4t = params["w4"].T                                   # (h3, out), tiny
    b1 = params["b1"].astype(jnp.float32).reshape(h1, 1)   # lane-broadcast
    b2 = params["b2"].astype(jnp.float32).reshape(h2, 1)
    b3 = params["b3"].astype(jnp.float32).reshape(h3, 1)
    b4 = params["b4"].astype(jnp.float32).reshape(1, out_size)  # row-broadcast

    # Activations / output follow the batch grid; weights & biases use a
    # constant index_map so Pallas keeps them VMEM-resident (DMA'd once).
    grid_spec = pltpu.PrefetchScalarGridSpec(
        num_scalar_prefetch=0,
        grid=(nb,),
        in_specs=[
            pl.BlockSpec((tb, in_size), lambda i: (i, 0)),
            pl.BlockSpec(w1.shape, lambda i: (0, 0)),
            pl.BlockSpec(b1.shape, lambda i: (0, 0)),
            pl.BlockSpec(w2.shape, lambda i: (0, 0)),
            pl.BlockSpec(b2.shape, lambda i: (0, 0)),
            pl.BlockSpec(w3.shape, lambda i: (0, 0)),
            pl.BlockSpec(b3.shape, lambda i: (0, 0)),
            pl.BlockSpec(w4t.shape, lambda i: (0, 0)),
            pl.BlockSpec(b4.shape, lambda i: (0, 0)),
        ],
        out_specs=pl.BlockSpec((tb, out_size), lambda i: (i, 0)),
    )

    # Honest cost hint so XLA schedules this small custom call sensibly.
    flops = 2 * padded * (in_size * h1 + h1 * h2 + h2 * h3 + h3 * out_size)
    transcendentals = padded * (h1 + h2 + h3)
    param_bytes = sum(int(a.size) * a.dtype.itemsize
                      for a in (w1, b1, w2, b2, w3, b3, w4t, b4))
    bytes_accessed = (padded * in_size * 4 + padded * out_size * 4
                      + param_bytes)

    kernel = functools.partial(
        mlp_kernel,
        tanh_dtype=jnp.bfloat16 if tanh_in_bf16 else jnp.float32)

    out = pl.pallas_call(
        kernel,
        out_shape=jax.ShapeDtypeStruct((padded, out_size), jnp.float32),
        grid_spec=grid_spec,
        compiler_params=pltpu.CompilerParams(
            dimension_semantics=("parallel",)),
        cost_estimate=pl.CostEstimate(
            flops=flops, transcendentals=transcendentals,
            bytes_accessed=bytes_accessed),
    )(x, w1, b1, w2, b2, w3, b3, w4t, b4)

    return out[:batch]


def init_params(key, input_size, h1, h2, h3, out_size,
                weight_dtype=jnp.bfloat16):
    """PyTorch-style Linear init (uniform +-1/sqrt(fan_in)), PyTorch layout:
    weights (out, in) in `weight_dtype` (bf16 default: MXU-native, half the
    weight DMA); biases (out,) kept f32 (bias-add / tanh run in f32)."""
    dims = [(input_size, h1), (h1, h2), (h2, h3), (h3, out_size)]
    params = {}
    for i, (fin, fout) in enumerate(dims, start=1):
        key, kw, kb = jax.random.split(key, 3)
        bound = 1.0 / (fin ** 0.5)
        params[f"w{i}"] = jax.random.uniform(
            kw, (fout, fin), jnp.float32, minval=-bound, maxval=bound
        ).astype(weight_dtype)
        params[f"b{i}"] = jax.random.uniform(
            kb, (fout,), jnp.float32, minval=-bound, maxval=bound)
    return params


def mlp_uint_reference(x, params):
    """Pure-JAX reference that mirrors the kernel's dtype handling
    (activations cast to the stored weight dtype for the matmuls, f32
    accumulation, f32 bias-add / tanh)."""
    wdt = params["w1"].dtype
    h = x
    for i in (1, 2, 3, 4):
        w = params[f"w{i}"]
        b = params[f"b{i}"].astype(jnp.float32)
        h = jnp.dot(h.astype(wdt), w.T,
                    preferred_element_type=jnp.float32) + b
        if i != 4:
            h = jnp.tanh(h)
    return h


if __name__ == "__main__":
    # Module-consistent feature sizes: common.history_seq_len=16, hidden=32,
    # aemlp.encode_size=8.  batch=200 exercises the batch-grid tiling
    # (tb=128 -> 2 grid steps) and the pad-and-slice tail path.
    batch = 200
    input_size = 16
    h1 = h2 = h3 = 32
    out_size = 8

    key = jax.random.PRNGKey(0)
    key, kx = jax.random.split(key)
    x = jax.random.normal(kx, (batch, input_size), dtype=jnp.float32)

    params = init_params(key, input_size, h1, h2, h3, out_size)  # bf16 weights

    out = mlp_uint_forward(x, params)
    out = jax.block_until_ready(out)

    ref = mlp_uint_reference(x, params)
    assert out.shape == (batch, out_size)
    # bf16 weights / bf16 MXU operands: compare against the dtype-mirrored
    # reference with a tolerance that absorbs accumulation-order / last-ulp
    # bf16 rounding differences but still catches any real layout error.
    assert jnp.allclose(out, ref, atol=2e-2, rtol=2e-2), float(
        jnp.max(jnp.abs(out - ref)))

    print("KERNEL_OK")
</pallas_src>

<mosaic_0001>
module attributes {stable_mosaic.version = 11 : i64} {
  func.func @mlp_kernel(%arg0: i32, %arg1: memref<128x16xf32, #tpu.memory_space<vmem>>, %arg2: memref<32x16xbf16, #tpu.memory_space<vmem>>, %arg3: memref<32x1xf32, #tpu.memory_space<vmem>>, %arg4: memref<32x32xbf16, #tpu.memory_space<vmem>>, %arg5: memref<32x1xf32, #tpu.memory_space<vmem>>, %arg6: memref<32x32xbf16, #tpu.memory_space<vmem>>, %arg7: memref<32x1xf32, #tpu.memory_space<vmem>>, %arg8: memref<32x8xbf16, #tpu.memory_space<vmem>>, %arg9: memref<1x8xf32, #tpu.memory_space<vmem>>, %arg10: memref<128x8xf32, #tpu.memory_space<vmem>>) attributes {dimension_semantics = [#tpu.dimension_semantics<parallel>], iteration_bounds = array<i64: 2>, scalar_prefetch = 0 : i64, scratch_operands = 0 : i64, tpu.core_type = #tpu.core_type<tc>, window_params = [{transform_indices = @transform_0, window_bounds = array<i64: 128, 16>}, {pipeline_mode = #tpu.pipeline_mode<synchronous>, transform_indices = @transform_1, window_bounds = array<i64: 32, 16>}, {pipeline_mode = #tpu.pipeline_mode<synchronous>, transform_indices = @transform_2, window_bounds = array<i64: 32, 1>}, {pipeline_mode = #tpu.pipeline_mode<synchronous>, transform_indices = @transform_3, window_bounds = array<i64: 32, 32>}, {pipeline_mode = #tpu.pipeline_mode<synchronous>, transform_indices = @transform_4, window_bounds = array<i64: 32, 1>}, {pipeline_mode = #tpu.pipeline_mode<synchronous>, transform_indices = @transform_5, window_bounds = array<i64: 32, 32>}, {pipeline_mode = #tpu.pipeline_mode<synchronous>, transform_indices = @transform_6, window_bounds = array<i64: 32, 1>}, {pipeline_mode = #tpu.pipeline_mode<synchronous>, transform_indices = @transform_7, window_bounds = array<i64: 32, 8>}, {pipeline_mode = #tpu.pipeline_mode<synchronous>, transform_indices = @transform_8, window_bounds = array<i64: 1, 8>}, {transform_indices = @transform_9, window_bounds = array<i64: 128, 8>}]} {
    %c0 = arith.constant 0 : index
    %c0_0 = arith.constant 0 : index
    %0 = vector.load %arg1[%c0, %c0_0] : memref<128x16xf32, #tpu.memory_space<vmem>>, vector<128x16xf32>
    %1 = arith.truncf %0 : vector<128x16xf32> to vector<128x16xbf16>
    %c0_1 = arith.constant 0 : index
    %c0_2 = arith.constant 0 : index
    %2 = vector.load %arg2[%c0_1, %c0_2] : memref<32x16xbf16, #tpu.memory_space<vmem>>, vector<32x16xbf16>
    %cst = arith.constant dense<0.000000e+00> : vector<32x128xf32>
    %3 = tpu.matmul %2, %1, %cst {dimension_numbers = #tpu.dot_dimension_numbers<[1], [1], [0], [0], [0, 0, 1, 0], [], []>} : vector<32x16xbf16>, vector<128x16xbf16>, vector<32x128xf32> -> vector<32x128xf32>
    %c0_3 = arith.constant 0 : index
    %c0_4 = arith.constant 0 : index
    %4 = vector.load %arg3[%c0_3, %c0_4] : memref<32x1xf32, #tpu.memory_space<vmem>>, vector<32x1xf32>
    %5 = vector.broadcast %4 : vector<32x1xf32> to vector<32x128xf32>
    %6 = arith.addf %3, %5 : vector<32x128xf32>
    %7 = math.tanh %6 : vector<32x128xf32>
    %8 = arith.truncf %7 : vector<32x128xf32> to vector<32x128xbf16>
    %c0_5 = arith.constant 0 : index
    %c0_6 = arith.constant 0 : index
    %9 = vector.load %arg4[%c0_5, %c0_6] : memref<32x32xbf16, #tpu.memory_space<vmem>>, vector<32x32xbf16>
    %cst_7 = arith.constant dense<0.000000e+00> : vector<32x128xf32>
    %10 = tpu.matmul %9, %8, %cst_7 {dimension_numbers = #tpu.dot_dimension_numbers<[1], [0], [0], [1], [0, 0, 1, 1], [], []>} : vector<32x32xbf16>, vector<32x128xbf16>, vector<32x128xf32> -> vector<32x128xf32>
    %c0_8 = arith.constant 0 : index
    %c0_9 = arith.constant 0 : index
    %11 = vector.load %arg5[%c0_8, %c0_9] : memref<32x1xf32, #tpu.memory_space<vmem>>, vector<32x1xf32>
    %12 = vector.broadcast %11 : vector<32x1xf32> to vector<32x128xf32>
    %13 = arith.addf %10, %12 : vector<32x128xf32>
    %14 = math.tanh %13 : vector<32x128xf32>
    %15 = arith.truncf %14 : vector<32x128xf32> to vector<32x128xbf16>
    %c0_10 = arith.constant 0 : index
    %c0_11 = arith.constant 0 : index
    %16 = vector.load %arg6[%c0_10, %c0_11] : memref<32x32xbf16, #tpu.memory_space<vmem>>, vector<32x32xbf16>
    %cst_12 = arith.constant dense<0.000000e+00> : vector<32x128xf32>
    %17 = tpu.matmul %16, %15, %cst_12 {dimension_numbers = #tpu.dot_dimension_numbers<[1], [0], [0], [1], [0, 0, 1, 1], [], []>} : vector<32x32xbf16>, vector<32x128xbf16>, vector<32x128xf32> -> vector<32x128xf32>
    %c0_13 = arith.constant 0 : index
    %c0_14 = arith.constant 0 : index
    %18 = vector.load %arg7[%c0_13, %c0_14] : memref<32x1xf32, #tpu.memory_space<vmem>>, vector<32x1xf32>
    %19 = vector.broadcast %18 : vector<32x1xf32> to vector<32x128xf32>
    %20 = arith.addf %17, %19 : vector<32x128xf32>
    %21 = math.tanh %20 : vector<32x128xf32>
    %22 = arith.truncf %21 : vector<32x128xf32> to vector<32x128xbf16>
    %c0_15 = arith.constant 0 : index
    %c0_16 = arith.constant 0 : index
    %23 = vector.load %arg8[%c0_15, %c0_16] : memref<32x8xbf16, #tpu.memory_space<vmem>>, vector<32x8xbf16>
    %cst_17 = arith.constant dense<0.000000e+00> : vector<128x8xf32>
    %24 = tpu.matmul %22, %23, %cst_17 {dimension_numbers = #tpu.dot_dimension_numbers<[0], [0], [1], [1], [0, 1, 1, 1], [], []>} : vector<32x128xbf16>, vector<32x8xbf16>, vector<128x8xf32> -> vector<128x8xf32>
    %c0_18 = arith.constant 0 : index
    %c0_19 = arith.constant 0 : index
    %25 = vector.load %arg9[%c0_18, %c0_19] : memref<1x8xf32, #tpu.memory_space<vmem>>, vector<1x8xf32>
    %26 = vector.broadcast %25 : vector<1x8xf32> to vector<128x8xf32>
    %27 = arith.addf %24, %26 : vector<128x8xf32>
    %c0_20 = arith.constant 0 : index
    %c0_21 = arith.constant 0 : index
    %28 = vector.load %arg10[%c0_20, %c0_21] : memref<128x8xf32, #tpu.memory_space<vmem>>, vector<128x8xf32>
    tpu.vector_store %arg10[%c0_20, %c0_21], %27 {strides = array<i32>} : memref<128x8xf32, #tpu.memory_space<vmem>>, vector<128x8xf32>,
    return
  }
  func.func @transform_0(%arg0: i32) -> (i32, i32) {
    %c0_i32 = arith.constant 0 : i32
    %c0_i32_0 = arith.constant 0 : i32
    return %arg0, %c0_i32 : i32, i32
  }
  func.func @transform_1(%arg0: i32) -> (i32, i32) {
    %c0_i32 = arith.constant 0 : i32
    %c0_i32_0 = arith.constant 0 : i32
    %c0_i32_1 = arith.constant 0 : i32
    return %c0_i32, %c0_i32_0 : i32, i32
  }
  func.func @transform_2(%arg0: i32) -> (i32, i32) {
    %c0_i32 = arith.constant 0 : i32
    %c0_i32_0 = arith.constant 0 : i32
    %c0_i32_1 = arith.constant 0 : i32
    return %c0_i32, %c0_i32_0 : i32, i32
  }
  func.func @transform_3(%arg0: i32) -> (i32, i32) {
    %c0_i32 = arith.constant 0 : i32
    %c0_i32_0 = arith.constant 0 : i32
    %c0_i32_1 = arith.constant 0 : i32
    return %c0_i32, %c0_i32_0 : i32, i32
  }
  func.func @transform_4(%arg0: i32) -> (i32, i32) {
    %c0_i32 = arith.constant 0 : i32
    %c0_i32_0 = arith.constant 0 : i32
    %c0_i32_1 = arith.constant 0 : i32
    return %c0_i32, %c0_i32_0 : i32, i32
  }
  func.func @transform_5(%arg0: i32) -> (i32, i32) {
    %c0_i32 = arith.constant 0 : i32
    %c0_i32_0 = arith.constant 0 : i32
    %c0_i32_1 = arith.constant 0 : i32
    return %c0_i32, %c0_i32_0 : i32, i32
  }
  func.func @transform_6(%arg0: i32) -> (i32, i32) {
    %c0_i32 = arith.constant 0 : i32
    %c0_i32_0 = arith.constant 0 : i32
    %c0_i32_1 = arith.constant 0 : i32
    return %c0_i32, %c0_i32_0 : i32, i32
  }
  func.func @transform_7(%arg0: i32) -> (i32, i32) {
    %c0_i32 = arith.constant 0 : i32
    %c0_i32_0 = arith.constant 0 : i32
    %c0_i32_1 = arith.constant 0 : i32
    return %c0_i32, %c0_i32_0 : i32, i32
  }
  func.func @transform_8(%arg0: i32) -> (i32, i32) {
    %c0_i32 = arith.constant 0 : i32
    %c0_i32_0 = arith.constant 0 : i32
    %c0_i32_1 = arith.constant 0 : i32
    return %c0_i32, %c0_i32_0 : i32, i32
  }
  func.func @transform_9(%arg0: i32) -> (i32, i32) {
    %c0_i32 = arith.constant 0 : i32
    %c0_i32_0 = arith.constant 0 : i32
    return %arg0, %c0_i32 : i32, i32
  }
}

</mosaic_0001>

<llo_original>
// kernel: mlp_uint_forward.1
$region0: #{mlp_uint_forward.1}
  #allocation0 [shape = 'u32[]', space=smem, size = 0x4, offset = 0x4, fixed_abs, tag = 'smem constant byte address 0x4 - core index']
  #allocation1 [shape = 'u32[144,128]{1,0:T(1,128)}', space=vmem, size = 0x12000, scoped, tag = 'internal scratch']
  %s0 = inlined_call_operand.vmem [shape: f32[256,16], index: 0, kind: input, shape index: {}]
  %s1 = inlined_call_operand.vmem [shape: bf16[32,16], index: 1, kind: input, shape index: {}]
  %s2 = inlined_call_operand.vmem [shape: f32[32,1], index: 2, kind: input, shape index: {}]
  %s3 = inlined_call_operand.vmem [shape: bf16[32,32], index: 3, kind: input, shape index: {}]
  %s4 = inlined_call_operand.vmem [shape: f32[32,1], index: 4, kind: input, shape index: {}]
  %s5 = inlined_call_operand.vmem [shape: bf16[32,32], index: 5, kind: input, shape index: {}]
  %s6 = inlined_call_operand.vmem [shape: f32[32,1], index: 6, kind: input, shape index: {}]
  %s7 = inlined_call_operand.vmem [shape: bf16[32,8], index: 7, kind: input, shape index: {}]
  %s8 = inlined_call_operand.vmem [shape: f32[1,8], index: 8, kind: input, shape index: {}]
  %s9 = inlined_call_operand.vmem [shape: f32[256,8], index: 9, kind: output, shape index: {}]
  %s10 = sld [smem:[#allocation0]]
  $region69: #{mlp_uint_forward.1} parent=0
    _
  %s12 = ssub.s32 1, %s10
  %s13 = scalar_select 0, %s12, %s10
  loop: start=0, step=1, limit=4
  $region2: #{mlp_uint_forward.1} parent=0 // loop_pre_header
    _
  $region3: #{mlp_uint_forward.1} parent=0 // loop_header
    %s15 = sphi 0, %s19
    %p16 = scmp.ge.s32.totalorder %s15, 4
    %s25 = sphi 0, %s27
    %s28 = sphi 0, %s25
    %s29 = sphi 0, %s28
    %s45 = sphi 0, %s29
    %s49 = sphi 0, %s49
    %s51 = sphi 0, %s49
    %s52 = sphi 0, %s51
    %s66 = sphi 0, %s52
    %s70 = sphi 0, %s70
    %s72 = sphi 0, %s70
    %s73 = sphi 0, %s72
    %s87 = sphi 0, %s73
    %s91 = sphi 0, %s91
    %s93 = sphi 0, %s91
    %s94 = sphi 0, %s93
    %s108 = sphi 0, %s94
    %s112 = sphi 0, %s112
    %s114 = sphi 0, %s112
    %s115 = sphi 0, %s114
    %s129 = sphi 0, %s115
    %s133 = sphi 0, %s133
    %s135 = sphi 0, %s133
    %s136 = sphi 0, %s135
    %s150 = sphi 0, %s136
    %s154 = sphi 0, %s154
    %s156 = sphi 0, %s154
    %s157 = sphi 0, %s156
    %s171 = sphi 0, %s157
    %s175 = sphi 0, %s175
    %s177 = sphi 0, %s175
    %s178 = sphi 0, %s177
    %s192 = sphi 0, %s178
    %s196 = sphi 0, %s196
    %s198 = sphi 0, %s196
    %s199 = sphi 0, %s198
    %s213 = sphi 0, %s199
    %s219 = sphi 0, %s221
    %s222 = sphi 0, %s219
    %s223 = sphi 0, %s222
    %s239 = sphi 0, %s223
  $region4: #{mlp_uint_forward.1} parent=0 // loop_header_branch
    %18 = sbr.rel (%p16) target = $region8
  $region5: #{mlp_uint_forward.1} parent=0 // loop_body
    %s20 = ssub.s32 %s15, 1
    %s21 = ssub.s32 %s15, 2
    %s22 = sadd.s32 %s15, 1
    %s23 = ssub.s32 %s15, %s22
    %p24 = scmp.eq.s32.totalorder %s23, 0
    %s26 = sadd.s32 %s25, 1
    %s27 = scalar_select %p24, %s25, %s26
    %p30 = pneg %p24
    %p31 = scmp.eq.s32.totalorder %s15, 1
    %p32 = por %p30, %p31
    %p33 = scmp.ne.s32.totalorder %s25, %s28
    %p34 = scmp.eq.s32.totalorder %s15, 0
    %p35 = por %p33, %p34
    %p36 = scmp.ne.s32.totalorder %s25, %s28
    %p37 = scmp.eq.s32.totalorder %s20, 1
    %p38 = por %p36, %p37
    %p39 = scmp.ne.s32.totalorder %s28, %s29
    %p40 = scmp.eq.s32.totalorder %s20, 0
    %p41 = por %p39, %p40
    %p42 = scmp.ne.s32.totalorder %s28, %s29
    %p43 = scmp.eq.s32.totalorder %s21, 1
    %p44 = por %p42, %p43
    %p46 = scmp.ne.s32.totalorder %s29, %s45
    %p47 = scmp.eq.s32.totalorder %s21, 0
    %p48 = por %p46, %p47
    %s50 = sadd.s32 %s49, 1
    %p53 = scmp.eq.s32.totalorder %s15, 1
    %p54 = scmp.ne.s32.totalorder %s49, %s51
    %p55 = scmp.eq.s32.totalorder %s15, 0
    %p56 = por %p54, %p55
    %p57 = scmp.ne.s32.totalorder %s49, %s51
    %p58 = scmp.eq.s32.totalorder %s20, 1
    %p59 = por %p57, %p58
    %p60 = scmp.ne.s32.totalorder %s51, %s52
    %p61 = scmp.eq.s32.totalorder %s20, 0
    %p62 = por %p60, %p61
    %p63 = scmp.ne.s32.totalorder %s51, %s52
    %p64 = scmp.eq.s32.totalorder %s21, 1
    %p65 = por %p63, %p64
    %p67 = scmp.ne.s32.totalorder %s52, %s66
    %p68 = scmp.eq.s32.totalorder %s21, 0
    %p69 = por %p67, %p68
    %s71 = sadd.s32 %s70, 1
    %p74 = scmp.eq.s32.totalorder %s15, 1
    %p75 = scmp.ne.s32.totalorder %s70, %s72
    %p76 = scmp.eq.s32.totalorder %s15, 0
    %p77 = por %p75, %p76
    %p78 = scmp.ne.s32.totalorder %s70, %s72
    %p79 = scmp.eq.s32.totalorder %s20, 1
    %p80 = por %p78, %p79
    %p81 = scmp.ne.s32.totalorder %s72, %s73
    %p82 = scmp.eq.s32.totalorder %s20, 0
    %p83 = por %p81, %p82
    %p84 = scmp.ne.s32.totalorder %s72, %s73
    %p85 = scmp.eq.s32.totalorder %s21, 1
    %p86 = por %p84, %p85
    %p88 = scmp.ne.s32.totalorder %s73, %s87
    %p89 = scmp.eq.s32.totalorder %s21, 0
    %p90 = por %p88, %p89
    %s92 = sadd.s32 %s91, 1
    %p95 = scmp.eq.s32.totalorder %s15, 1
    %p96 = scmp.ne.s32.totalorder %s91, %s93
    %p97 = scmp.eq.s32.totalorder %s15, 0
    %p98 = por %p96, %p97
    %p99 = scmp.ne.s32.totalorder %s91, %s93
    %p100 = scmp.eq.s32.totalorder %s20, 1
    %p101 = por %p99, %p100
    %p102 = scmp.ne.s32.totalorder %s93, %s94
    %p103 = scmp.eq.s32.totalorder %s20, 0
    %p104 = por %p102, %p103
    %p105 = scmp.ne.s32.totalorder %s93, %s94
    %p106 = scmp.eq.s32.totalorder %s21, 1
    %p107 = por %p105, %p106
    %p109 = scmp.ne.s32.totalorder %s94, %s108
    %p110 = scmp.eq.s32.totalorder %s21, 0
    %p111 = por %p109, %p110
    %s113 = sadd.s32 %s112, 1
    %p116 = scmp.eq.s32.totalorder %s15, 1
    %p117 = scmp.ne.s32.totalorder %s112, %s114
    %p118 = scmp.eq.s32.totalorder %s15, 0
    %p119 = por %p117, %p118
    %p120 = scmp.ne.s32.totalorder %s112, %s114
    %p121 = scmp.eq.s32.totalorder %s20, 1
    %p122 = por %p120, %p121
    %p123 = scmp.ne.s32.totalorder %s114, %s115
    %p124 = scmp.eq.s32.totalorder %s20, 0
    %p125 = por %p123, %p124
    %p126 = scmp.ne.s32.totalorder %s114, %s115
    %p127 = scmp.eq.s32.totalorder %s21, 1
    %p128 = por %p126, %p127
    %p130 = scmp.ne.s32.totalorder %s115, %s129
    %p131 = scmp.eq.s32.totalorder %s21, 0
    %p132 = por %p130, %p131
    %s134 = sadd.s32 %s133, 1
    %p137 = scmp.eq.s32.totalorder %s15, 1
    %p138 = scmp.ne.s32.totalorder %s133, %s135
    %p139 = scmp.eq.s32.totalorder %s15, 0
    %p140 = por %p138, %p139
    %p141 = scmp.ne.s32.totalorder %s133, %s135
    %p142 = scmp.eq.s32.totalorder %s20, 1
    %p143 = por %p141, %p142
    %p144 = scmp.ne.s32.totalorder %s135, %s136
    %p145 = scmp.eq.s32.totalorder %s20, 0
    %p146 = por %p144, %p145
    %p147 = scmp.ne.s32.totalorder %s135, %s136
    %p148 = scmp.eq.s32.totalorder %s21, 1
    %p149 = por %p147, %p148
    %p151 = scmp.ne.s32.totalorder %s136, %s150
    %p152 = scmp.eq.s32.totalorder %s21, 0
    %p153 = por %p151, %p152
    %s155 = sadd.s32 %s154, 1
    %p158 = scmp.eq.s32.totalorder %s15, 1
    %p159 = scmp.ne.s32.totalorder %s154, %s156
    %p160 = scmp.eq.s32.totalorder %s15, 0
    %p161 = por %p159, %p160
    %p162 = scmp.ne.s32.totalorder %s154, %s156
    %p163 = scmp.eq.s32.totalorder %s20, 1
    %p164 = por %p162, %p163
    %p165 = scmp.ne.s32.totalorder %s156, %s157
    %p166 = scmp.eq.s32.totalorder %s20, 0
    %p167 = por %p165, %p166
    %p168 = scmp.ne.s32.totalorder %s156, %s157
    %p169 = scmp.eq.s32.totalorder %s21, 1
    %p170 = por %p168, %p169
    %p172 = scmp.ne.s32.totalorder %s157, %s171
    %p173 = scmp.eq.s32.totalorder %s21, 0
    %p174 = por %p172, %p173
    %s176 = sadd.s32 %s175, 1
    %p179 = scmp.eq.s32.totalorder %s15, 1
    %p180 = scmp.ne.s32.totalorder %s175, %s177
    %p181 = scmp.eq.s32.totalorder %s15, 0
    %p182 = por %p180, %p181
    %p183 = scmp.ne.s32.totalorder %s175, %s177
    %p184 = scmp.eq.s32.totalorder %s20, 1
    %p185 = por %p183, %p184
    %p186 = scmp.ne.s32.totalorder %s177, %s178
    %p187 = scmp.eq.s32.totalorder %s20, 0
    %p188 = por %p186, %p187
    %p189 = scmp.ne.s32.totalorder %s177, %s178
    %p190 = scmp.eq.s32.totalorder %s21, 1
    %p191 = por %p189, %p190
    %p193 = scmp.ne.s32.totalorder %s178, %s192
    %p194 = scmp.eq.s32.totalorder %s21, 0
    %p195 = por %p193, %p194
    %s197 = sadd.s32 %s196, 1
    %p200 = scmp.eq.s32.totalorder %s15, 1
    %p201 = scmp.ne.s32.totalorder %s196, %s198
    %p202 = scmp.eq.s32.totalorder %s15, 0
    %p203 = por %p201, %p202
    %p204 = scmp.ne.s32.totalorder %s196, %s198
    %p205 = scmp.eq.s32.totalorder %s20, 1
    %p206 = por %p204, %p205
    %p207 = scmp.ne.s32.totalorder %s198, %s199
    %p208 = scmp.eq.s32.totalorder %s20, 0
    %p209 = por %p207, %p208
    %p210 = scmp.ne.s32.totalorder %s198, %s199
    %p211 = scmp.eq.s32.totalorder %s21, 1
    %p212 = por %p210, %p211
    %p214 = scmp.ne.s32.totalorder %s199, %s213
    %p215 = scmp.eq.s32.totalorder %s21, 0
    %p216 = por %p214, %p215
    %s217 = ssub.s32 %s15, %s22
    %p218 = scmp.eq.s32.totalorder %s217, 0
    %s220 = sadd.s32 %s219, 1
    %s221 = scalar_select %p218, %s219, %s220
    %p224 = pneg %p218
    %p225 = scmp.eq.s32.totalorder %s15, 1
    %p226 = por %p224, %p225
    %p227 = scmp.ne.s32.totalorder %s219, %s222
    %p228 = scmp.eq.s32.totalorder %s15, 0
    %p229 = por %p227, %p228
    %p230 = scmp.ne.s32.totalorder %s219, %s222
    %p231 = scmp.eq.s32.totalorder %s20, 1
    %p232 = por %p230, %p231
    %p233 = scmp.ne.s32.totalorder %s222, %s223
    %p234 = scmp.eq.s32.totalorder %s20, 0
    %p235 = por %p233, %p234
    %p236 = scmp.ne.s32.totalorder %s222, %s223
    %p237 = scmp.eq.s32.totalorder %s21, 1
    %p238 = por %p236, %p237
    %p240 = scmp.ne.s32.totalorder %s223, %s239
    %p241 = scmp.eq.s32.totalorder %s21, 0
    %p242 = por %p240, %p241
    %p243 = scmp.le.s32.totalorder 1, %s15
    %p244 = scmp.lt.s32.totalorder %s15, 3
    %p245 = pnand %p243, %p244
    %p246 = pneg %p245
    // Predicated region
    $region9: #{mlp_uint_forward.1} parent=5 // pred_check
      _
    $region10: #{mlp_uint_forward.1} parent=5 // pred_check_branch
      %248 = sbr.rel (%p245) target = $region12
    $region11: #{mlp_uint_forward.1} parent=5 // pred_region
      %s249 = ssub.s32 %s15, 1
      // Predicated region
      $region13: #{mlp_uint_forward.1} parent=11 // pred_check
        %p250 = pneg %p62
      $region14: #{mlp_uint_forward.1} parent=11 // pred_check_branch
        %252 = sbr.rel (%p250) target = $region16
      $region15: #{mlp_uint_forward.1} parent=11 // pred_region
        _
      $region16: #{mlp_uint_forward.1} parent=11 // pred_fallthru
        _
      // Predicated region
      $region17: #{mlp_uint_forward.1} parent=11 // pred_check
        %p253 = pneg %p83
      $region18: #{mlp_uint_forward.1} parent=11 // pred_check_branch
        %255 = sbr.rel (%p253) target = $region20
      $region19: #{mlp_uint_forward.1} parent=11 // pred_region
        _
      $region20: #{mlp_uint_forward.1} parent=11 // pred_fallthru
        _
      // Predicated region
      $region21: #{mlp_uint_forward.1} parent=11 // pred_check
        %p256 = pneg %p104
      $region22: #{mlp_uint_forward.1} parent=11 // pred_check_branch
        %258 = sbr.rel (%p256) target = $region24
      $region23: #{mlp_uint_forward.1} parent=11 // pred_region
        _
      $region24: #{mlp_uint_forward.1} parent=11 // pred_fallthru
        _
      // Predicated region
      $region25: #{mlp_uint_forward.1} parent=11 // pred_check
        %p259 = pneg %p125
      $region26: #{mlp_uint_forward.1} parent=11 // pred_check_branch
        %261 = sbr.rel (%p259) target = $region28
      $region27: #{mlp_uint_forward.1} parent=11 // pred_region
        _
      $region28: #{mlp_uint_forward.1} parent=11 // pred_fallthru
        _
      // Predicated region
      $region29: #{mlp_uint_forward.1} parent=11 // pred_check
        %p262 = pneg %p146
      $region30: #{mlp_uint_forward.1} parent=11 // pred_check_branch
        %264 = sbr.rel (%p262) target = $region32
      $region31: #{mlp_uint_forward.1} parent=11 // pred_region
        _
      $region32: #{mlp_uint_forward.1} parent=11 // pred_fallthru
        _
      // Predicated region
      $region33: #{mlp_uint_forward.1} parent=11 // pred_check
        %p265 = pneg %p167
      $region34: #{mlp_uint_forward.1} parent=11 // pred_check_branch
        %267 = sbr.rel (%p265) target = $region36
      $region35: #{mlp_uint_forward.1} parent=11 // pred_region
        _
      $region36: #{mlp_uint_forward.1} parent=11 // pred_fallthru
        _
      // Predicated region
      $region37: #{mlp_uint_forward.1} parent=11 // pred_check
        %p268 = pneg %p188
      $region38: #{mlp_uint_forward.1} parent=11 // pred_check_branch
        %270 = sbr.rel (%p268) target = $region40
      $region39: #{mlp_uint_forward.1} parent=11 // pred_region
        _
      $region40: #{mlp_uint_forward.1} parent=11 // pred_fallthru
        _
      // Predicated region
      $region41: #{mlp_uint_forward.1} parent=11 // pred_check
        %p271 = pneg %p209
      $region42: #{mlp_uint_forward.1} parent=11 // pred_check_branch
        %273 = sbr.rel (%p271) target = $region44
      $region43: #{mlp_uint_forward.1} parent=11 // pred_region
        _
      $region44: #{mlp_uint_forward.1} parent=11 // pred_fallthru
        _
    $region12: #{mlp_uint_forward.1} parent=5 // pred_fallthru
      _
    %p274 = scmp.lt.s32.totalorder %s15, 2
    // Predicated region
    $region45: #{mlp_uint_forward.1} parent=5 // pred_check
      %p275 = pneg %p274
    $region46: #{mlp_uint_forward.1} parent=5 // pred_check_branch
      %277 = sbr.rel (%p275) target = $region48
    $region47: #{mlp_uint_forward.1} parent=5 // pred_region
      // Predicated region
      $region49: #{mlp_uint_forward.1} parent=47 // pred_check
        %p278 = pneg %p35
      $region50: #{mlp_uint_forward.1} parent=47 // pred_check_branch
        %280 = sbr.rel (%p278) target = $region52
      $region51: #{mlp_uint_forward.1} parent=47 // pred_region
        %s281 = smul.u32 16, %s15
        %p282 = scmp.lt.s32.totalorder %s281, 31
        %s283 = scalar_select %p282, %s281, 31
        %s284 = smul.addr %s283, 8
        %s285 = scalar_lea.vmem %s0, %s284
        %s286 = smul.u32 16, %s15
      $region52: #{mlp_uint_forward.1} parent=47 // pred_fallthru
        _
    $region48: #{mlp_uint_forward.1} parent=5 // pred_fallthru
      _
    %p287 = scmp.le.s32.totalorder 1, %s15
    %p288 = scmp.lt.s32.totalorder %s15, 3
    %p289 = pnand %p287, %p288
    %p290 = pneg %p289
    // Predicated region
    $region53: #{mlp_uint_forward.1} parent=5 // pred_check
      _
    $region54: #{mlp_uint_forward.1} parent=5 // pred_check_branch
      %292 = sbr.rel (%p289) target = $region56
    $region55: #{mlp_uint_forward.1} parent=5 // pred_region
      %s293 = ssub.s32 %s15, 1
      %s294 = smul.u32 16, %s20
      %p295 = scmp.lt.s32.totalorder %s294, 31
      %s296 = scalar_select %p295, %s294, 31
      %s297 = smul.addr %s296, 8
      %s298 = scalar_lea.vmem %s0, %s297
      %p299 = pneg %p41
      %p300 = pneg %p38
      %p301 = pneg %p62
      %p302 = pneg %p59
      %p303 = pneg %p83
      %p304 = pneg %p80
      %p305 = pneg %p104
      %p306 = pneg %p101
      %p307 = pneg %p125
      %p308 = pneg %p122
      %p309 = pneg %p146
      %p310 = pneg %p143
      %p311 = pneg %p167
      %p312 = pneg %p164
      %p313 = pneg %p188
      %p314 = pneg %p185
      %p315 = pneg %p209
      %p316 = pneg %p206
      %p317 = pneg %p235
      %p318 = pneg %p232
      %s319 = smul.u32 16, %s20
      %p320 = scmp.lt.s32.totalorder %s319, 31
      %s321 = scalar_select %p320, %s319, 31
      %s322 = smul.addr %s321, 8
      %s323 = scalar_lea.vmem %s9, %s322
      %s324 = smul.u32 16, %s20
      %p325 = scmp.lt.s32.totalorder %s324, 31
      %s326 = scalar_select %p325, %s324, 31
      %s327 = smul.addr %s326, 8
      %s328 = scalar_lea.vmem %s0, %s327
      %s329 = smul.u32 16, %s20
      %s330 = smul.u32 16, %s20
      %p331 = scmp.lt.s32.totalorder %s330, 31
      %s332 = scalar_select %p331, %s330, 31
      %s333 = smul.addr %s332, 8
      %s334 = scalar_lea.vmem %s9, %s333
      %s335 = smul.u32 16, %s20
      %v337 = vld [vmem:[%s328] sm:$0xff]
      %v338 = vld [vmem:[%s328 + $0x8] sm:$0xff]
      %v339 = vld [vmem:[%s328 + $0x10] sm:$0xff]
      %v340 = vld [vmem:[%s328 + $0x18] sm:$0xff]
      %v341 = vld [vmem:[%s328 + $0x20] sm:$0xff]
      %v342 = vld [vmem:[%s328 + $0x28] sm:$0xff]
      %v343 = vld [vmem:[%s328 + $0x30] sm:$0xff]
      %v344 = vld [vmem:[%s328 + $0x38] sm:$0xff]
      %v345 = vld [vmem:[%s328 + $0x40] sm:$0xff]
      %v346 = vld [vmem:[%s328 + $0x48] sm:$0xff]
      %v347 = vld [vmem:[%s328 + $0x50] sm:$0xff]
      %v348 = vld [vmem:[%s328 + $0x58] sm:$0xff]
      %v349 = vld [vmem:[%s328 + $0x60] sm:$0xff]
      %v350 = vld [vmem:[%s328 + $0x68] sm:$0xff]
      %v351 = vld [vmem:[%s328 + $0x70] sm:$0xff]
      %v352 = vld [vmem:[%s328 + $0x78] sm:$0xff]
      %v353 = vpack.c.bf16 %v338, %v337
      %v354 = vpack.c.bf16 %v340, %v339
      %v355 = vpack.c.bf16 %v342, %v341
      %v356 = vpack.c.bf16 %v344, %v343
      %v357 = vpack.c.bf16 %v346, %v345
      %v358 = vpack.c.bf16 %v348, %v347
      %v359 = vpack.c.bf16 %v350, %v349
      %v360 = vpack.c.bf16 %v352, %v351
      %v361 = vld [vmem:[%s1] sm:$0xf]
      %v362 = vld [vmem:[%s1 + $0x4] sm:$0xf]
      %v363 = vld [vmem:[%s1 + $0x8] sm:$0xf]
      %v364 = vld [vmem:[%s1 + $0xc] sm:$0xf]
      %v365 = vld [vmem:[%s2] sm:$0xff]
      %v366 = vld [vmem:[%s2 + $0x8] sm:$0xff]
      %v367 = vld [vmem:[%s2 + $0x10] sm:$0xff]
      %v368 = vld [vmem:[%s2 + $0x18] sm:$0xff]
      %370 = vset.pattern.permute.xlu0 0
      %371 = vperm.xlu0 %370, %v365
      %v372 = vpop.permute.xlu0 %371
      %375 = vset.pattern.permute.xlu0 0
      %376 = vperm.xlu0 %375, %v366
      %v377 = vpop.permute.xlu0 %376
      %380 = vset.pattern.permute.xlu0 0
      %381 = vperm.xlu0 %380, %v367
      %v382 = vpop.permute.xlu0 %381
      %385 = vset.pattern.permute.xlu0 0
      %386 = vperm.xlu0 %385, %v368
      %v387 = vpop.permute.xlu0 %386
      %v393 = vunpack.c.l.b16 %v361
      %v394 = vunpack.c.l.b16 %v362
      %v395 = vunpack.c.l.b16 %v363
      %v396 = vunpack.c.l.b16 %v364
      %v397 = vpack.c.b16 %v394, %v393
      %v398 = vpack.c.b16 %v396, %v395
      %vm399 = vcmask 130048
      %v401 = vsel %vm399, %v397, 0
      %v404 = vsel %vm399, %v398, 0
      %v407 = vsel %vm399, %v353, 0
      %v410 = vsel %vm399, %v354, 0
      %v413 = vsel %vm399, %v355, 0
      %v416 = vsel %vm399, %v356, 0
      %v419 = vsel %vm399, %v357, 0
      %v422 = vsel %vm399, %v358, 0
      %v425 = vsel %vm399, %v359, 0
      %v428 = vsel %vm399, %v360, 0
      %430 = vmatprep.subr.bf16.mxu0 0
      %431 = vmatpush1.bf16.xpose.msra.mxu0 %v407
      %432 = vmatprep.subr.bf16.mxu0 0
      %433 = vmatpush1.bf16.xpose.msra.mxu0 %v410
      %434 = vmatprep.subr.bf16.mxu0 0
      %435 = vmatpush1.bf16.xpose.msra.mxu0 %v413
      %436 = vmatprep.subr.bf16.mxu0 0
      %437 = vmatpush1.bf16.xpose.msra.mxu0 %v416
      %438 = vmatprep.subr.bf16.mxu0 0
      %439 = vmatpush1.bf16.xpose.msra.mxu0 %v419
      %440 = vmatprep.subr.bf16.mxu0 0
      %441 = vmatpush1.bf16.xpose.msra.mxu0 %v422
      %442 = vmatprep.subr.bf16.mxu0 0
      %443 = vmatpush1.bf16.xpose.msra.mxu0 %v425
      %444 = vmatprep.subr.bf16.mxu0 0
      %445 = vmatpush1.bf16.xpose.msra.mxu0 %v428
      %446 = vmatprep.subr.bf16.mxu0 0
      %447 = vmatpush1.bf16.xpose.msra.mxu0 0
      %448 = vmatprep.subr.bf16.mxu0 0
      %449 = vmatpush1.bf16.xpose.msra.mxu0 0
      %450 = vmatprep.subr.bf16.mxu0 0
      %451 = vmatpush1.bf16.xpose.msra.mxu0 0
      %452 = vmatprep.subr.bf16.mxu0 0
      %453 = vmatpush1.bf16.xpose.msra.mxu0 0
      %454 = vmatprep.subr.bf16.mxu0 0
      %455 = vmatpush1.bf16.xpose.msra.mxu0 0
      %456 = vmatprep.subr.bf16.mxu0 0
      %457 = vmatpush1.bf16.xpose.msra.mxu0 0
      %458 = vmatprep.subr.bf16.mxu0 0
      %459 = vmatpush1.bf16.xpose.msra.mxu0 0
      %460 = vmatprep.subr.bf16.mxu0 0
      %461 = vmatpush1.bf16.xpose.msra.mxu0 0
      %462 = vmatprep.mubr.bf16.mxu0 0
      %463 = vmatmul.mubr.bf16.gmra.mrb[0].mxu0 %v401
      %v464 = vpop.f32.mrb[0].mxu0
      %v465 = vadd.f32 %v372, %v464
      %v466 = vpop.f32.mrb[0].mxu0
      %v467 = vpop.f32.mrb[0].mxu0
      %v468 = vadd.f32 %v377, %v467
      %v469 = vpop.f32.mrb[0].mxu0
      %470 = vmatprep.mubr.bf16.mxu0 0
      %471 = vmatmul.mubr.bf16.gmra.mrb[0].mxu0 %v404
      %v472 = vpop.f32.mrb[0].mxu0
      %v473 = vadd.f32 %v382, %v472
      %v474 = vpop.f32.mrb[0].mxu0
      %v475 = vpop.f32.mrb[0].mxu0
      %v476 = vadd.f32 %v387, %v475
      %v477 = vpop.f32.mrb[0].mxu0
      %478 = vdwg.mxu0
      %v479 = vtanh.pop %v465
      %v480 = vtanh.pop %v468
      %v481 = vtanh.pop %v473
      %v482 = vtanh.pop %v476
      %v483 = vpack.c.bf16 %v480, %v479
      %v484 = vpack.c.bf16 %v482, %v481
      %v485 = vld [vmem:[%s3] sm:$0xf]
      %v486 = vld [vmem:[%s3 + $0x4] sm:$0xf]
      %v487 = vld [vmem:[%s3 + $0x8] sm:$0xf]
      %v488 = vld [vmem:[%s3 + $0xc] sm:$0xf]
      %v489 = vld [vmem:[%s4] sm:$0xff]
      %v490 = vld [vmem:[%s4 + $0x8] sm:$0xff]
      %v491 = vld [vmem:[%s4 + $0x10] sm:$0xff]
      %v492 = vld [vmem:[%s4 + $0x18] sm:$0xff]
      %494 = vset.pattern.permute.xlu0 0
      %495 = vperm.xlu0 %494, %v489
      %v496 = vpop.permute.xlu0 %495
      %499 = vset.pattern.permute.xlu0 0
      %500 = vperm.xlu0 %499, %v490
      %v501 = vpop.permute.xlu0 %500
      %504 = vset.pattern.permute.xlu0 0
      %505 = vperm.xlu0 %504, %v491
      %v506 = vpop.permute.xlu0 %505
      %509 = vset.pattern.permute.xlu0 0
      %510 = vperm.xlu0 %509, %v492
      %v511 = vpop.permute.xlu0 %510
      %v517 = vunpack.c.l.b16 %v485
      %v518 = vunpack.c.l.b16 %v486
      %v519 = vunpack.c.l.b16 %v487
      %v520 = vunpack.c.l.b16 %v488
      %v521 = vpack.c.b16 %v518, %v517
      %v522 = vpack.c.b16 %v520, %v519
      %vm523 = vcmask 261120
      %v525 = vsel %vm523, %v521, 0
      %v528 = vsel %vm523, %v522, 0
      %530 = vmatprep.subr.bf16.mxu0 0
      %531 = vmatpush1.bf16.msra.mxu0 %v483
      %532 = vmatprep.subr.bf16.mxu0 0
      %533 = vmatpush1.bf16.msra.mxu0 %v484
      %534 = vmatprep.subr.bf16.mxu0 0
      %535 = vmatpush1.bf16.msra.mxu0 0
      %536 = vmatprep.subr.bf16.mxu0 0
      %537 = vmatpush1.bf16.msra.mxu0 0
      %538 = vmatprep.subr.bf16.mxu0 0
      %539 = vmatpush1.bf16.msra.mxu0 0
      %540 = vmatprep.subr.bf16.mxu0 0
      %541 = vmatpush1.bf16.msra.mxu0 0
      %542 = vmatprep.subr.bf16.mxu0 0
      %543 = vmatpush1.bf16.msra.mxu0 0
      %544 = vmatprep.subr.bf16.mxu0 0
      %545 = vmatpush1.bf16.msra.mxu0 0
      %546 = vmatprep.subr.bf16.mxu0 0
      %547 = vmatpush1.bf16.msra.mxu0 0
      %548 = vmatprep.subr.bf16.mxu0 0
      %549 = vmatpush1.bf16.msra.mxu0 0
      %550 = vmatprep.subr.bf16.mxu0 0
      %551 = vmatpush1.bf16.msra.mxu0 0
      %552 = vmatprep.subr.bf16.mxu0 0
      %553 = vmatpush1.bf16.msra.mxu0 0
      %554 = vmatprep.subr.bf16.mxu0 0
      %555 = vmatpush1.bf16.msra.mxu0 0
      %556 = vmatprep.subr.bf16.mxu0 0
      %557 = vmatpush1.bf16.msra.mxu0 0
      %558 = vmatprep.subr.bf16.mxu0 0
      %559 = vmatpush1.bf16.msra.mxu0 0
      %560 = vmatprep.subr.bf16.mxu0 0
      %561 = vmatpush1.bf16.msra.mxu0 0
      %562 = vmatprep.mubr.bf16.mxu0 0
      %563 = vmatmul.mubr.bf16.gmra.mrb[0].mxu0 %v525
      %v564 = vpop.f32.mrb[0].mxu0
      %v565 = vadd.f32 %v496, %v564
      %v566 = vpop.f32.mrb[0].mxu0
      %v567 = vpop.f32.mrb[0].mxu0
      %v568 = vadd.f32 %v501, %v567
      %v569 = vpop.f32.mrb[0].mxu0
      %570 = vmatprep.mubr.bf16.mxu0 0
      %571 = vmatmul.mubr.bf16.gmra.mrb[0].mxu0 %v528
      %v572 = vpop.f32.mrb[0].mxu0
      %v573 = vadd.f32 %v506, %v572
      %v574 = vpop.f32.mrb[0].mxu0
      %v575 = vpop.f32.mrb[0].mxu0
      %v576 = vadd.f32 %v511, %v575
      %v577 = vpop.f32.mrb[0].mxu0
      %578 = vdwg.mxu0
      %v579 = vtanh.pop %v565
      %v580 = vtanh.pop %v568
      %v581 = vtanh.pop %v573
      %v582 = vtanh.pop %v576
      %v583 = vpack.c.bf16 %v580, %v579
      %v584 = vpack.c.bf16 %v582, %v581
      %v585 = vld [vmem:[%s5] sm:$0xf]
      %v586 = vld [vmem:[%s5 + $0x4] sm:$0xf]
      %v587 = vld [vmem:[%s5 + $0x8] sm:$0xf]
      %v588 = vld [vmem:[%s5 + $0xc] sm:$0xf]
      %v589 = vld [vmem:[%s6] sm:$0xff]
      %v590 = vld [vmem:[%s6 + $0x8] sm:$0xff]
      %v591 = vld [vmem:[%s6 + $0x10] sm:$0xff]
      %v592 = vld [vmem:[%s6 + $0x18] sm:$0xff]
      %594 = vset.pattern.permute.xlu0 0
      %595 = vperm.xlu0 %594, %v589
      %v596 = vpop.permute.xlu0 %595
      %599 = vset.pattern.permute.xlu0 0
      %600 = vperm.xlu0 %599, %v590
      %v601 = vpop.permute.xlu0 %600
      %604 = vset.pattern.permute.xlu0 0
      %605 = vperm.xlu0 %604, %v591
      %v606 = vpop.permute.xlu0 %605
      %609 = vset.pattern.permute.xlu0 0
      %610 = vperm.xlu0 %609, %v592
      %v611 = vpop.permute.xlu0 %610
      %v617 = vunpack.c.l.b16 %v585
      %v618 = vunpack.c.l.b16 %v586
      %v619 = vunpack.c.l.b16 %v587
      %v620 = vunpack.c.l.b16 %v588
      %v621 = vpack.c.b16 %v618, %v617
      %v622 = vpack.c.b16 %v620, %v619
      %v624 = vsel %vm523, %v621, 0
      %v627 = vsel %vm523, %v622, 0
      %629 = vmatprep.subr.bf16.mxu0 0
      %630 = vmatpush1.bf16.msra.mxu0 %v583
      %631 = vmatprep.subr.bf16.mxu0 0
      %632 = vmatpush1.bf16.msra.mxu0 %v584
      %633 = vmatprep.subr.bf16.mxu0 0
      %634 = vmatpush1.bf16.msra.mxu0 0
      %635 = vmatprep.subr.bf16.mxu0 0
      %636 = vmatpush1.bf16.msra.mxu0 0
      %637 = vmatprep.subr.bf16.mxu0 0
      %638 = vmatpush1.bf16.msra.mxu0 0
      %639 = vmatprep.subr.bf16.mxu0 0
      %640 = vmatpush1.bf16.msra.mxu0 0
      %641 = vmatprep.subr.bf16.mxu0 0
      %642 = vmatpush1.bf16.msra.mxu0 0
      %643 = vmatprep.subr.bf16.mxu0 0
      %644 = vmatpush1.bf16.msra.mxu0 0
      %645 = vmatprep.subr.bf16.mxu0 0
      %646 = vmatpush1.bf16.msra.mxu0 0
      %647 = vmatprep.subr.bf16.mxu0 0
      %648 = vmatpush1.bf16.msra.mxu0 0
      %649 = vmatprep.subr.bf16.mxu0 0
      %650 = vmatpush1.bf16.msra.mxu0 0
      %651 = vmatprep.subr.bf16.mxu0 0
      %652 = vmatpush1.bf16.msra.mxu0 0
      %653 = vmatprep.subr.bf16.mxu0 0
      %654 = vmatpush1.bf16.msra.mxu0 0
      %655 = vmatprep.subr.bf16.mxu0 0
      %656 = vmatpush1.bf16.msra.mxu0 0
      %657 = vmatprep.subr.bf16.mxu0 0
      %658 = vmatpush1.bf16.msra.mxu0 0
      %659 = vmatprep.subr.bf16.mxu0 0
      %660 = vmatpush1.bf16.msra.mxu0 0
      %661 = vmatprep.mubr.bf16.mxu0 0
      %662 = vmatmul.mubr.bf16.gmra.mrb[0].mxu0 %v624
      %v663 = vpop.f32.mrb[0].mxu0
      %v664 = vadd.f32 %v596, %v663
      %v665 = vpop.f32.mrb[0].mxu0
      %v666 = vpop.f32.mrb[0].mxu0
      %v667 = vadd.f32 %v601, %v666
      %v668 = vpop.f32.mrb[0].mxu0
      %669 = vmatprep.mubr.bf16.mxu0 0
      %670 = vmatmul.mubr.bf16.gmra.mrb[0].mxu0 %v627
      %v671 = vpop.f32.mrb[0].mxu0
      %v672 = vadd.f32 %v606, %v671
      %v673 = vpop.f32.mrb[0].mxu0
      %v674 = vpop.f32.mrb[0].mxu0
      %v675 = vadd.f32 %v611, %v674
      %v676 = vpop.f32.mrb[0].mxu0
      %677 = vdwg.mxu0
      %v678 = vtanh.pop %v664
      %v679 = vtanh.pop %v667
      %v680 = vtanh.pop %v672
      %v681 = vtanh.pop %v675
      %v682 = vpack.c.bf16 %v679, %v678
      %v683 = vpack.c.bf16 %v681, %v680
      %v684 = vld [vmem:[%s7] sm:$0xf]
      %v685 = vld [vmem:[%s7 + $0x4] sm:$0xf]
      %v686 = vld [vmem:[%s7 + $0x8] sm:$0xf]
      %v687 = vld [vmem:[%s7 + $0xc] sm:$0xf]
      %v688 = vld [vmem:[%s8] sm:$0x1]
      %v690 = vlaneseq
      %v691 = vshrl.u32 %v690, 7
      %v692 = vsub.s32 0, %v691
      %v693 = vrot.slane %v688, %v692
      %695 = vxpose.xlu0.c.b16.start [1/8] %v682, 128
      %696 = vxpose.xlu0.c.b16.cont [2/8] %v683, 128
      %697 = vxpose.xlu0.c.b16.cont [3/8] 0, 128
      %698 = vxpose.xlu0.c.b16.cont [4/8] 0, 128
      %699 = vxpose.xlu0.c.b16.cont [5/8] 0, 128
      %700 = vxpose.xlu0.c.b16.cont [6/8] 0, 128
      %701 = vxpose.xlu0.c.b16.cont [7/8] 0, 128
      %702 = vxpose.xlu0.c.b16.end [8/8] 0, 128
      %v703 = vpop.trf.xlu0
      %v704 = vpop.trf.xlu0
      %v705 = vpop.trf.xlu0
      %v706 = vpop.trf.xlu0
      %v707 = vpop.trf.xlu0
      %v708 = vpop.trf.xlu0
      %v709 = vpop.trf.xlu0
      %v710 = vpop.trf.xlu0
      %v715 = vunpack.c.l.b16 %v684
      %v716 = vunpack.c.l.b16 %v685
      %v717 = vunpack.c.l.b16 %v686
      %v718 = vunpack.c.l.b16 %v687
      %v719 = vpack.c.b16 %v716, %v715
      %v720 = vpack.c.b16 %v718, %v717
      %v724 = vsel %vm523, %v703, 0
      %v727 = vsel %vm523, %v704, 0
      %v730 = vsel %vm523, %v705, 0
      %v733 = vsel %vm523, %v706, 0
      %v736 = vsel %vm523, %v707, 0
      %v739 = vsel %vm523, %v708, 0
      %v742 = vsel %vm523, %v709, 0
      %v745 = vsel %vm523, %v710, 0
      %747 = vmatprep.subr.bf16.mxu0 0
      %748 = vmatpush1.bf16.msra.mxu0 %v719
      %749 = vmatprep.subr.bf16.mxu0 0
      %750 = vmatpush1.bf16.msra.mxu0 %v720
      %751 = vmatprep.subr.bf16.mxu0 0
      %752 = vmatpush1.bf16.msra.mxu0 0
      %753 = vmatprep.subr.bf16.mxu0 0
      %754 = vmatpush1.bf16.msra.mxu0 0
      %755 = vmatprep.subr.bf16.mxu0 0
      %756 = vmatpush1.bf16.msra.mxu0 0
      %757 = vmatprep.subr.bf16.mxu0 0
      %758 = vmatpush1.bf16.msra.mxu0 0
      %759 = vmatprep.subr.bf16.mxu0 0
      %760 = vmatpush1.bf16.msra.mxu0 0
      %761 = vmatprep.subr.bf16.mxu0 0
      %762 = vmatpush1.bf16.msra.mxu0 0
      %763 = vmatprep.subr.bf16.mxu0 0
      %764 = vmatpush1.bf16.msra.mxu0 0
      %765 = vmatprep.subr.bf16.mxu0 0
      %766 = vmatpush1.bf16.msra.mxu0 0
      %767 = vmatprep.subr.bf16.mxu0 0
      %768 = vmatpush1.bf16.msra.mxu0 0
      %769 = vmatprep.subr.bf16.mxu0 0
      %770 = vmatpush1.bf16.msra.mxu0 0
      %771 = vmatprep.subr.bf16.mxu0 0
      %772 = vmatpush1.bf16.msra.mxu0 0
      %773 = vmatprep.subr.bf16.mxu0 0
      %774 = vmatpush1.bf16.msra.mxu0 0
      %775 = vmatprep.subr.bf16.mxu0 0
      %776 = vmatpush1.bf16.msra.mxu0 0
      %777 = vmatprep.subr.bf16.mxu0 0
      %778 = vmatpush1.bf16.msra.mxu0 0
      %779 = vmatprep.mubr.bf16.mxu0 0
      %780 = vmatmul.mubr.bf16.gmra.mrb[0].mxu0 %v724
      %v781 = vpop.f32.mrb[0].mxu0
      %v782 = vadd.f32 %v693, %v781
      %v783 = vpop.f32.mrb[0].mxu0
      %v784 = vpop.f32.mrb[0].mxu0
      %v785 = vadd.f32 %v693, %v784
      %v786 = vpop.f32.mrb[0].mxu0
      %787 = vmatprep.mubr.bf16.mxu0 0
      %788 = vmatmul.mubr.bf16.gmra.mrb[0].mxu0 %v727
      %v789 = vpop.f32.mrb[0].mxu0
      %v790 = vadd.f32 %v693, %v789
      %v791 = vpop.f32.mrb[0].mxu0
      %v792 = vpop.f32.mrb[0].mxu0
      %v793 = vadd.f32 %v693, %v792
      %v794 = vpop.f32.mrb[0].mxu0
      %795 = vmatprep.mubr.bf16.mxu0 0
      %796 = vmatmul.mubr.bf16.gmra.mrb[0].mxu0 %v730
      %v797 = vpop.f32.mrb[0].mxu0
      %v798 = vadd.f32 %v693, %v797
      %v799 = vpop.f32.mrb[0].mxu0
      %v800 = vpop.f32.mrb[0].mxu0
      %v801 = vadd.f32 %v693, %v800
      %v802 = vpop.f32.mrb[0].mxu0
      %803 = vmatprep.mubr.bf16.mxu0 0
      %804 = vmatmul.mubr.bf16.gmra.mrb[0].mxu0 %v733
      %v805 = vpop.f32.mrb[0].mxu0
      %v806 = vadd.f32 %v693, %v805
      %v807 = vpop.f32.mrb[0].mxu0
      %v808 = vpop.f32.mrb[0].mxu0
      %v809 = vadd.f32 %v693, %v808
      %v810 = vpop.f32.mrb[0].mxu0
      %811 = vmatprep.mubr.bf16.mxu0 0
      %812 = vmatmul.mubr.bf16.gmra.mrb[0].mxu0 %v736
      %v813 = vpop.f32.mrb[0].mxu0
      %v814 = vadd.f32 %v693, %v813
      %v815 = vpop.f32.mrb[0].mxu0
      %v816 = vpop.f32.mrb[0].mxu0
      %v817 = vadd.f32 %v693, %v816
      %v818 = vpop.f32.mrb[0].mxu0
      %819 = vmatprep.mubr.bf16.mxu0 0
      %820 = vmatmul.mubr.bf16.gmra.mrb[0].mxu0 %v739
      %v821 = vpop.f32.mrb[0].mxu0
      %v822 = vadd.f32 %v693, %v821
      %v823 = vpop.f32.mrb[0].mxu0
      %v824 = vpop.f32.mrb[0].mxu0
      %v825 = vadd.f32 %v693, %v824
      %v826 = vpop.f32.mrb[0].mxu0
      %827 = vmatprep.mubr.bf16.mxu0 0
      %828 = vmatmul.mubr.bf16.gmra.mrb[0].mxu0 %v742
      %v829 = vpop.f32.mrb[0].mxu0
      %v830 = vadd.f32 %v693, %v829
      %v831 = vpop.f32.mrb[0].mxu0
      %v832 = vpop.f32.mrb[0].mxu0
      %v833 = vadd.f32 %v693, %v832
      %v834 = vpop.f32.mrb[0].mxu0
      %835 = vmatprep.mubr.bf16.mxu0 0
      %836 = vmatmul.mubr.bf16.gmra.mrb[0].mxu0 %v745
      %v837 = vpop.f32.mrb[0].mxu0
      %v838 = vadd.f32 %v693, %v837
      %v839 = vpop.f32.mrb[0].mxu0
      %v840 = vpop.f32.mrb[0].mxu0
      %v841 = vadd.f32 %v693, %v840
      %v842 = vpop.f32.mrb[0].mxu0
      %843 = vdwg.mxu0
      %vm844 = vcmask 64512
      %845 = vst.msk [vmem:[%s334] sm:$0xff] %vm844, %v782
      %846 = vst.msk [vmem:[%s334 + $0x8] sm:$0xff] %vm844, %v785
      %847 = vst.msk [vmem:[%s334 + $0x10] sm:$0xff] %vm844, %v790
      %848 = vst.msk [vmem:[%s334 + $0x18] sm:$0xff] %vm844, %v793
      %849 = vst.msk [vmem:[%s334 + $0x20] sm:$0xff] %vm844, %v798
      %850 = vst.msk [vmem:[%s334 + $0x28] sm:$0xff] %vm844, %v801
      %851 = vst.msk [vmem:[%s334 + $0x30] sm:$0xff] %vm844, %v806
      %852 = vst.msk [vmem:[%s334 + $0x38] sm:$0xff] %vm844, %v809
      %853 = vst.msk [vmem:[%s334 + $0x40] sm:$0xff] %vm844, %v814
      %854 = vst.msk [vmem:[%s334 + $0x48] sm:$0xff] %vm844, %v817
      %855 = vst.msk [vmem:[%s334 + $0x50] sm:$0xff] %vm844, %v822
      %856 = vst.msk [vmem:[%s334 + $0x58] sm:$0xff] %vm844, %v825
      %857 = vst.msk [vmem:[%s334 + $0x60] sm:$0xff] %vm844, %v830
      %858 = vst.msk [vmem:[%s334 + $0x68] sm:$0xff] %vm844, %v833
      %859 = vst.msk [vmem:[%s334 + $0x70] sm:$0xff] %vm844, %v838
      %860 = vst.msk [vmem:[%s334 + $0x78] sm:$0xff] %vm844, %v841
      %s861 = smul.u32 16, %s20
      %p862 = scmp.lt.s32.totalorder %s861, 31
      %s863 = scalar_select %p862, %s861, 31
      %s864 = smul.addr %s863, 8
      %s865 = scalar_lea.vmem %s9, %s864
      // Predicated region
      $region57: #{mlp_uint_forward.1} parent=55 // pred_check
        %p866 = pneg %p232
      $region58: #{mlp_uint_forward.1} parent=55 // pred_check_branch
        %868 = sbr.rel (%p866) target = $region60
      $region59: #{mlp_uint_forward.1} parent=55 // pred_region
        %s869 = smul.u32 16, %s20
      $region60: #{mlp_uint_forward.1} parent=55 // pred_fallthru
        _
    $region56: #{mlp_uint_forward.1} parent=5 // pred_fallthru
      _
    %p870 = scmp.le.s32.totalorder 2, %s15
    // Predicated region
    $region61: #{mlp_uint_forward.1} parent=5 // pred_check
      %p871 = pneg %p870
    $region62: #{mlp_uint_forward.1} parent=5 // pred_check_branch
      %873 = sbr.rel (%p871) target = $region64
    $region63: #{mlp_uint_forward.1} parent=5 // pred_region
      %s874 = ssub.s32 %s15, 2
      // Predicated region
      $region65: #{mlp_uint_forward.1} parent=63 // pred_check
        %p875 = pneg %p238
      $region66: #{mlp_uint_forward.1} parent=63 // pred_check_branch
        %877 = sbr.rel (%p875) target = $region68
      $region67: #{mlp_uint_forward.1} parent=63 // pred_region
        %s878 = smul.u32 16, %s21
        %p879 = scmp.lt.s32.totalorder %s878, 31
        %s880 = scalar_select %p879, %s878, 31
        %s881 = smul.addr %s880, 8
        %s882 = scalar_lea.vmem %s9, %s881
      $region68: #{mlp_uint_forward.1} parent=63 // pred_fallthru
        _
    $region64: #{mlp_uint_forward.1} parent=5 // pred_fallthru
      _
  $region6: #{mlp_uint_forward.1} parent=0 // loop_footer
    %s19 = sadd.s32 1, %s15
  $region7: #{mlp_uint_forward.1} parent=0 // loop_footer_branch
    %14 = sbr.rel target = $region3
  $region8: #{mlp_uint_forward.1} parent=0 // loop_exit
    _

</llo_original>
